<compile_context>
chip_gen: v7x
topology: tpu7x:2x2x1
jax: 0.10.0
libtpu: 0.0.40
codegen_flags: <defaults>
</compile_context>

<pallas_src>
import functools

import jax
import jax.numpy as jnp
from jax import lax
from jax.experimental import pallas as pl
from jax.experimental.pallas import tpu as pltpu


# --------------------------------------------------------------------------
# shared per-tile math
# --------------------------------------------------------------------------
def _unpack_params(p_ref):
    b1 = p_ref[0:1, :]        # (1, H)
    w2 = p_ref[1:2, :]        # (1, H)
    b2 = p_ref[2:3, 0:1]      # (1, 1)
    return b1, w2, b2


def _tile_terms(real, fake, eps, w1, b1, w2, b2, g):
    """Partial sums for one batch tile.

    real/fake: (TB, C) f32, eps: (TB, 1) f32 (broadcast over lanes),
    w1: (C, H), b1/w2: (1, H), b2: (1, 1),
    g: optional (H, H) Gram matrix W1^T @ W1 (used when C > H).
    Returns (sum D(real), sum D(fake), sum (||grad||-1)^2), each (1, 1) f32.
    """
    tb = real.shape[0]

    interp = real * eps + fake * (1.0 - eps)                        # (TB, C)

    # One fused MXU call for all three first-layer forwards.
    x = jnp.concatenate([interp, real, fake], axis=0)               # (3TB, C)
    h = jnp.dot(x, w1, preferred_element_type=jnp.float32) + b1     # (3TB, H)

    h_interp = h[:tb]                                               # (TB, H)
    a_real = jnp.maximum(h[tb:2 * tb], 0.0)                         # (TB, H)
    a_fake = jnp.maximum(h[2 * tb:], 0.0)                           # (TB, H)

    # Second layer as VPU multiply + reduce (no degenerate N=1 matmuls).
    sum_d_real = (jnp.sum(a_real * w2, axis=(0, 1), keepdims=True)
                  + b2 * float(tb))                                 # (1, 1)
    sum_d_fake = (jnp.sum(a_fake * w2, axis=(0, 1), keepdims=True)
                  + b2 * float(tb))                                 # (1, 1)

    # Analytic gradient of sum(D(x)) at x = interp:
    #   grad = (relu'(h_interp) * w2) @ W1^T              (TB, C)
    u = (h_interp > 0.0).astype(jnp.float32) * w2                   # (TB, H)
    if g is not None:
        # ||grad_b||^2 = u_b (W1^T W1) u_b^T  -> (TB, C) never materialized.
        ug = jnp.dot(u, g, preferred_element_type=jnp.float32)      # (TB, H)
        sq_norm = jnp.sum(ug * u, axis=1, keepdims=True)            # (TB, 1)
    else:
        grad = lax.dot_general(u, w1, (((1,), (1,)), ((), ())),
                               preferred_element_type=jnp.float32)  # (TB, C)
        sq_norm = jnp.sum(grad * grad, axis=1, keepdims=True)       # (TB, 1)

    grad_norm = jnp.sqrt(sq_norm)                                   # (TB, 1)
    sum_gp = jnp.sum((grad_norm - 1.0) ** 2, axis=(0, 1), keepdims=True)

    return sum_d_real, sum_d_fake, sum_gp


# --------------------------------------------------------------------------
# kernels
# --------------------------------------------------------------------------
def _disc_loss_single_kernel(real_ref, fake_ref, eps_ref, w1_ref, p_ref,
                             out_ref, *, lamb):
    """Grid-less small-problem path: everything resident in VMEM."""
    real = real_ref[...].astype(jnp.float32)     # (B, C)
    fake = fake_ref[...].astype(jnp.float32)     # (B, C)
    eps = eps_ref[...].astype(jnp.float32)       # (B, 1)
    w1 = w1_ref[...].astype(jnp.float32)         # (C, H)
    b1, w2, b2 = _unpack_params(p_ref)

    s_real, s_fake, s_gp = _tile_terms(real, fake, eps, w1, b1, w2, b2, None)
    inv_b = 1.0 / float(real.shape[0])
    out_ref[...] = (-(s_real - s_fake) + lamb * s_gp) * inv_b


def _disc_loss_tiled_kernel(*refs, lamb, inv_b, use_gram):
    """Batch-tiled path: (1,1) output block is a resident accumulator."""
    if use_gram:
        real_ref, fake_ref, eps_ref, w1_ref, p_ref, g_ref, out_ref = refs
    else:
        real_ref, fake_ref, eps_ref, w1_ref, p_ref, out_ref = refs
        g_ref = None

    @pl.when(pl.program_id(0) == 0)
    def _():
        out_ref[...] = jnp.zeros_like(out_ref)

    real = real_ref[...].astype(jnp.float32)     # (TB, C)
    fake = fake_ref[...].astype(jnp.float32)     # (TB, C)
    eps = eps_ref[...].astype(jnp.float32)       # (TB, 1)
    w1 = w1_ref[...].astype(jnp.float32)         # (C, H)  (resident)
    b1, w2, b2 = _unpack_params(p_ref)
    g = g_ref[...] if use_gram else None

    s_real, s_fake, s_gp = _tile_terms(real, fake, eps, w1, b1, w2, b2, g)
    out_ref[...] += (-(s_real - s_fake) + lamb * s_gp) * inv_b


# --------------------------------------------------------------------------
# wrapper
# --------------------------------------------------------------------------
def _pack_params(b1, w2, b2, h_dim):
    """Pack b1 / w2 / b2 into one (3, H) f32 slab (row2[0] = b2)."""
    b2_row = jnp.zeros((1, h_dim), jnp.float32).at[0, 0].set(
        b2.reshape(()).astype(jnp.float32))
    return jnp.concatenate([b1.reshape(1, h_dim).astype(jnp.float32),
                            w2.reshape(1, h_dim).astype(jnp.float32),
                            b2_row], axis=0)


def discriminator_loss_pallas(real, fake, eps, w1, b1, w2, b2, lamb,
                              *, block_b=None):
    """WGAN-GP discriminator loss.  `eps` is the (B, 1) per-row epsilon."""
    B, C = real.shape
    H = w1.shape[1]
    eps = eps.reshape(B, 1).astype(jnp.float32)
    pvec = _pack_params(b1, w2, b2, H)

    if block_b is None or block_b >= B:
        # Small-problem path: no grid (no per-step pipeline bookkeeping).
        kernel = functools.partial(_disc_loss_single_kernel, lamb=float(lamb))
        out = pl.pallas_call(
            kernel,
            out_shape=jax.ShapeDtypeStruct((1, 1), jnp.float32),
            in_specs=[pl.BlockSpec(memory_space=pltpu.MemorySpace.VMEM)] * 5,
            out_specs=pl.BlockSpec(memory_space=pltpu.MemorySpace.VMEM),
        )(real, fake, eps, w1, pvec)
        return out[0, 0]

    # -------- batch-tiled path (production sizes) --------
    assert B % block_b == 0, "B must be divisible by block_b"
    assert block_b % 8 == 0, "block_b must be a multiple of the f32 sublane (8)"
    # VMEM budget per step (double-buffered activations):
    #   ~ 2 * (2*block_b*C + block_b) * 4  +  (C*H + 3*H + H*H) * 4 bytes.
    # Size block_b against the 32 MiB scoped default (v5e/v6e) and v7x's
    # 64 MiB physical VMEM.
    use_gram = C > H
    inputs = [real, fake, eps, w1, pvec]
    in_specs = [
        pl.BlockSpec((block_b, C), lambda i: (i, 0)),
        pl.BlockSpec((block_b, C), lambda i: (i, 0)),
        pl.BlockSpec((block_b, 1), lambda i: (i, 0)),
        pl.BlockSpec((C, H), lambda i: (0, 0)),       # resident weights
        pl.BlockSpec((3, H), lambda i: (0, 0)),       # resident packed b1/w2/b2
    ]
    if use_gram:
        # Gram matrix for the gradient-penalty norm (wrapper-side, computed once).
        gmat = jnp.dot(w1.T.astype(jnp.float32), w1.astype(jnp.float32))  # (H, H)
        inputs.append(gmat)
        in_specs.append(pl.BlockSpec((H, H), lambda i: (0, 0)))

    kernel = functools.partial(_disc_loss_tiled_kernel, lamb=float(lamb),
                               inv_b=1.0 / float(B), use_gram=use_gram)
    # TODO(synk): on v7x (2 TensorCores) emit per-core partial sums
    # (output shape (num_cores, 1), batch axis "parallel") instead of this
    # single-core sequential accumulation.
    out = pl.pallas_call(
        kernel,
        out_shape=jax.ShapeDtypeStruct((1, 1), jnp.float32),
        grid_spec=pltpu.PrefetchScalarGridSpec(
            num_scalar_prefetch=0,
            grid=(B // block_b,),
            in_specs=in_specs,
            out_specs=pl.BlockSpec((1, 1), lambda i: (0, 0)),
        ),
        compiler_params=pltpu.CompilerParams(
            dimension_semantics=("arbitrary",)),
    )(*inputs)
    return out[0, 0]


# --------------------------------------------------------------------------
# pure-JAX reference (autograd gradient penalty), for correctness check
# --------------------------------------------------------------------------
def _disc_ref(x, w1, b1, w2, b2):
    h = x @ w1 + b1
    return jnp.maximum(h, 0.0) @ w2.T + b2


def discriminator_loss_ref(real, fake, eps, w1, b1, w2, b2, lamb):
    eps_full = jnp.broadcast_to(eps.reshape(real.shape[0], 1), real.shape)
    interp = real * eps_full + fake * (1.0 - eps_full)
    grad = jax.grad(lambda z: jnp.sum(_disc_ref(z, w1, b1, w2, b2)))(interp)
    grad = grad.reshape(grad.shape[0], -1)
    gnorm = jnp.sqrt(jnp.sum(grad * grad, axis=1))
    gp = jnp.mean((gnorm - 1.0) ** 2)
    d_real = _disc_ref(real, w1, b1, w2, b2)
    d_fake = _disc_ref(fake, w1, b1, w2, b2)
    return -1.0 * (jnp.mean(d_real) - jnp.mean(d_fake)) + lamb * gp


if __name__ == "__main__":
    lamb = 10.0

    # ---------------- small path (grid-less kernel) ----------------
    B, C, H = 8, 32, 64
    ks = jax.random.split(jax.random.PRNGKey(0), 7)
    real = jax.random.normal(ks[0], (B, C), dtype=jnp.float32)
    fake = jax.random.normal(ks[1], (B, C), dtype=jnp.float32)
    # torch.rand((B,1)).repeat(1, C): one epsilon per row -> pass the (B,1) column
    eps = jax.random.uniform(ks[2], (B, 1), dtype=jnp.float32)
    w1 = jax.random.normal(ks[3], (C, H), dtype=jnp.float32) * 0.1
    b1 = jax.random.normal(ks[4], (1, H), dtype=jnp.float32) * 0.01
    w2 = jax.random.normal(ks[5], (1, H), dtype=jnp.float32) * 0.1
    b2 = jax.random.normal(ks[6], (1, 1), dtype=jnp.float32) * 0.01

    loss = jax.block_until_ready(
        discriminator_loss_pallas(real, fake, eps, w1, b1, w2, b2, lamb))
    loss_ref = jax.block_until_ready(
        discriminator_loss_ref(real, fake, eps, w1, b1, w2, b2, lamb))
    assert jnp.allclose(loss, loss_ref, rtol=1e-4, atol=1e-4), (loss, loss_ref)

    # -------- batch-tiled path (C > H -> Gram-matrix gradient penalty) ------
    B2, C2, H2, TB = 64, 160, 64, 32
    ks2 = jax.random.split(jax.random.PRNGKey(1), 7)
    real2 = jax.random.normal(ks2[0], (B2, C2), dtype=jnp.float32)
    fake2 = jax.random.normal(ks2[1], (B2, C2), dtype=jnp.float32)
    eps2 = jax.random.uniform(ks2[2], (B2, 1), dtype=jnp.float32)
    w1_2 = jax.random.normal(ks2[3], (C2, H2), dtype=jnp.float32) * 0.05
    b1_2 = jax.random.normal(ks2[4], (1, H2), dtype=jnp.float32) * 0.01
    w2_2 = jax.random.normal(ks2[5], (1, H2), dtype=jnp.float32) * 0.05
    b2_2 = jax.random.normal(ks2[6], (1, 1), dtype=jnp.float32) * 0.01

    loss2 = jax.block_until_ready(
        discriminator_loss_pallas(real2, fake2, eps2, w1_2, b1_2, w2_2, b2_2,
                                  lamb, block_b=TB))
    loss2_ref = jax.block_until_ready(
        discriminator_loss_ref(real2, fake2, eps2, w1_2, b1_2, w2_2, b2_2, lamb))
    assert jnp.allclose(loss2, loss2_ref, rtol=1e-4, atol=1e-4), (loss2, loss2_ref)

    print("KERNEL_OK")
</pallas_src>

<mosaic_0001>
module attributes {stable_mosaic.version = 11 : i64} {
  func.func @_disc_loss_single_kernel(%arg0: memref<8x32xf32, #tpu.memory_space<vmem>>, %arg1: memref<8x32xf32, #tpu.memory_space<vmem>>, %arg2: memref<8x1xf32, #tpu.memory_space<vmem>>, %arg3: memref<32x64xf32, #tpu.memory_space<vmem>>, %arg4: memref<3x64xf32, #tpu.memory_space<vmem>>, %arg5: memref<1x1xf32, #tpu.memory_space<vmem>>) attributes {dimension_semantics = [], scalar_prefetch = 0 : i64, scratch_operands = 0 : i64, tpu.core_type = #tpu.core_type<tc>} {
    %c0 = arith.constant 0 : index
    %c0_0 = arith.constant 0 : index
    %0 = vector.load %arg0[%c0, %c0_0] : memref<8x32xf32, #tpu.memory_space<vmem>>, vector<8x32xf32>
    %c0_1 = arith.constant 0 : index
    %c0_2 = arith.constant 0 : index
    %1 = vector.load %arg1[%c0_1, %c0_2] : memref<8x32xf32, #tpu.memory_space<vmem>>, vector<8x32xf32>
    %c0_3 = arith.constant 0 : index
    %c0_4 = arith.constant 0 : index
    %2 = vector.load %arg2[%c0_3, %c0_4] : memref<8x1xf32, #tpu.memory_space<vmem>>, vector<8x1xf32>
    %c0_5 = arith.constant 0 : index
    %c0_6 = arith.constant 0 : index
    %3 = vector.load %arg3[%c0_5, %c0_6] : memref<32x64xf32, #tpu.memory_space<vmem>>, vector<32x64xf32>
    %c0_7 = arith.constant 0 : index
    %c0_8 = arith.constant 0 : index
    %4 = vector.load %arg4[%c0_7, %c0_8] : memref<3x64xf32, #tpu.memory_space<vmem>>, vector<1x64xf32>
    %c1 = arith.constant 1 : index
    %c0_9 = arith.constant 0 : index
    %5 = vector.load %arg4[%c1, %c0_9] : memref<3x64xf32, #tpu.memory_space<vmem>>, vector<1x64xf32>
    %c2 = arith.constant 2 : index
    %c0_10 = arith.constant 0 : index
    %6 = vector.load %arg4[%c2, %c0_10] : memref<3x64xf32, #tpu.memory_space<vmem>>, vector<1x1xf32>
    %7 = vector.broadcast %2 : vector<8x1xf32> to vector<8x32xf32>
    %8 = arith.mulf %0, %7 : vector<8x32xf32>
    %cst = arith.constant 1.000000e+00 : f32
    %9 = vector.broadcast %cst : f32 to vector<8x1xf32>
    %10 = arith.subf %9, %2 : vector<8x1xf32>
    %11 = vector.broadcast %10 : vector<8x1xf32> to vector<8x32xf32>
    %12 = arith.mulf %1, %11 : vector<8x32xf32>
    %13 = arith.addf %8, %12 : vector<8x32xf32>
    %14 = tpu.concatenate %13, %0, %1 in 0 : vector<8x32xf32>, vector<8x32xf32>, vector<8x32xf32> -> vector<24x32xf32>
    %cst_11 = arith.constant dense<0.000000e+00> : vector<24x64xf32>
    %15 = tpu.matmul %14, %3, %cst_11 {dimension_numbers = #tpu.dot_dimension_numbers<[1], [0], [0], [1], [0, 0, 1, 1], [], []>} : vector<24x32xf32>, vector<32x64xf32>, vector<24x64xf32> -> vector<24x64xf32>
    %16 = vector.broadcast %4 : vector<1x64xf32> to vector<24x64xf32>
    %17 = arith.addf %15, %16 : vector<24x64xf32>
    %18 = vector.extract_strided_slice %17 {offsets = [0, 0], sizes = [8, 64], strides = [1, 1]} : vector<24x64xf32> to vector<8x64xf32>
    %19 = vector.extract_strided_slice %17 {offsets = [8, 0], sizes = [8, 64], strides = [1, 1]} : vector<24x64xf32> to vector<8x64xf32>
    %cst_12 = arith.constant 0.000000e+00 : f32
    %20 = vector.broadcast %cst_12 : f32 to vector<8x64xf32>
    %21 = arith.maximumf %19, %20 : vector<8x64xf32>
    %22 = vector.extract_strided_slice %17 {offsets = [16, 0], sizes = [8, 64], strides = [1, 1]} : vector<24x64xf32> to vector<8x64xf32>
    %cst_13 = arith.constant 0.000000e+00 : f32
    %23 = vector.broadcast %cst_13 : f32 to vector<8x64xf32>
    %24 = arith.maximumf %22, %23 : vector<8x64xf32>
    %25 = vector.broadcast %5 : vector<1x64xf32> to vector<8x64xf32>
    %26 = arith.mulf %21, %25 : vector<8x64xf32>
    %27 = vector.shape_cast %26 : vector<8x64xf32> to vector<1x8x64xf32>
    %cst_14 = arith.constant dense<0.000000e+00> : vector<1xf32>
    %28 = vector.multi_reduction <add>, %27, %cst_14 [1, 2] : vector<1x8x64xf32> to vector<1xf32>
    %29 = vector.shape_cast %28 : vector<1xf32> to vector<1x1x1xf32>
    %30 = vector.extract %29[0, 0, 0] : f32 from vector<1x1x1xf32>
    %31 = vector.broadcast %30 : f32 to vector<1x1xf32>
    %cst_15 = arith.constant 8.000000e+00 : f32
    %32 = vector.broadcast %cst_15 : f32 to vector<1x1xf32>
    %33 = arith.mulf %6, %32 : vector<1x1xf32>
    %34 = arith.addf %31, %33 : vector<1x1xf32>
    %35 = vector.broadcast %5 : vector<1x64xf32> to vector<8x64xf32>
    %36 = arith.mulf %24, %35 : vector<8x64xf32>
    %37 = vector.shape_cast %36 : vector<8x64xf32> to vector<1x8x64xf32>
    %cst_16 = arith.constant dense<0.000000e+00> : vector<1xf32>
    %38 = vector.multi_reduction <add>, %37, %cst_16 [1, 2] : vector<1x8x64xf32> to vector<1xf32>
    %39 = vector.shape_cast %38 : vector<1xf32> to vector<1x1x1xf32>
    %40 = vector.extract %39[0, 0, 0] : f32 from vector<1x1x1xf32>
    %41 = vector.broadcast %40 : f32 to vector<1x1xf32>
    %cst_17 = arith.constant 8.000000e+00 : f32
    %42 = vector.broadcast %cst_17 : f32 to vector<1x1xf32>
    %43 = arith.mulf %6, %42 : vector<1x1xf32>
    %44 = arith.addf %41, %43 : vector<1x1xf32>
    %cst_18 = arith.constant 0.000000e+00 : f32
    %45 = vector.broadcast %cst_18 : f32 to vector<8x64xf32>
    %46 = arith.cmpf ogt, %18, %45 : vector<8x64xf32>
    %47 = arith.extui %46 : vector<8x64xi1> to vector<8x64xi32>
    %48 = arith.sitofp %47 : vector<8x64xi32> to vector<8x64xf32>
    %49 = vector.broadcast %5 : vector<1x64xf32> to vector<8x64xf32>
    %50 = arith.mulf %48, %49 : vector<8x64xf32>
    %cst_19 = arith.constant dense<0.000000e+00> : vector<8x32xf32>
    %51 = tpu.matmul %50, %3, %cst_19 {dimension_numbers = #tpu.dot_dimension_numbers<[1], [1], [0], [0], [0, 0, 1, 0], [], []>} : vector<8x64xf32>, vector<32x64xf32>, vector<8x32xf32> -> vector<8x32xf32>
    %52 = arith.mulf %51, %51 : vector<8x32xf32>
    %cst_20 = arith.constant dense<0.000000e+00> : vector<8xf32>
    %53 = vector.multi_reduction <add>, %52, %cst_20 [1] : vector<8x32xf32> to vector<8xf32>
    %54 = vector.shape_cast %53 : vector<8xf32> to vector<8x1xf32>
    %55 = math.sqrt %54 : vector<8x1xf32>
    %cst_21 = arith.constant 1.000000e+00 : f32
    %56 = vector.broadcast %cst_21 : f32 to vector<8x1xf32>
    %57 = arith.subf %55, %56 : vector<8x1xf32>
    %58 = arith.mulf %57, %57 : vector<8x1xf32>
    %59 = vector.shape_cast %58 : vector<8x1xf32> to vector<1x8x1xf32>
    %cst_22 = arith.constant dense<0.000000e+00> : vector<1xf32>
    %60 = vector.multi_reduction <add>, %59, %cst_22 [1, 2] : vector<1x8x1xf32> to vector<1xf32>
    %61 = vector.shape_cast %60 : vector<1xf32> to vector<1x1x1xf32>
    %62 = vector.extract %61[0, 0, 0] : f32 from vector<1x1x1xf32>
    %63 = vector.broadcast %62 : f32 to vector<1x1xf32>
    %64 = arith.subf %34, %44 : vector<1x1xf32>
    %cst_23 = arith.constant 0.000000e+00 : f32
    %65 = vector.broadcast %cst_23 : f32 to vector<1x1xf32>
    %66 = arith.subf %65, %64 : vector<1x1xf32>
    %cst_24 = arith.constant 1.000000e+01 : f32
    %67 = vector.broadcast %cst_24 : f32 to vector<1x1xf32>
    %68 = arith.mulf %67, %63 : vector<1x1xf32>
    %69 = arith.addf %66, %68 : vector<1x1xf32>
    %cst_25 = arith.constant 1.250000e-01 : f32
    %70 = vector.broadcast %cst_25 : f32 to vector<1x1xf32>
    %71 = arith.mulf %69, %70 : vector<1x1xf32>
    %c0_26 = arith.constant 0 : index
    %c0_27 = arith.constant 0 : index
    %72 = vector.load %arg5[%c0_26, %c0_27] : memref<1x1xf32, #tpu.memory_space<vmem>>, vector<1x1xf32>
    tpu.vector_store %arg5[%c0_26, %c0_27], %71 {strides = array<i32>} : memref<1x1xf32, #tpu.memory_space<vmem>>, vector<1x1xf32>,
    return
  }
}

</mosaic_0001>

<llo_original>
// kernel: tpu_custom_call.1
$region0: #{tpu_custom_call.1}
  #allocation0 [shape = 'u32[]', space=smem, size = 0x4, offset = 0x4, fixed_abs, tag = 'smem constant byte address 0x4 - core index']
  #allocation1 [shape = 'u32[144,128]{1,0:T(1,128)}', space=vmem, size = 0x12000, scoped, tag = 'internal scratch']
  %s0 = inlined_call_operand.vmem [shape: f32[8,32], index: 0, kind: input, shape index: {}]
  %s1 = inlined_call_operand.hbm [shape: f32[8,32], index: 1, kind: input, shape index: {}]
  %s2 = inlined_call_operand.vmem [shape: f32[8,1], index: 2, kind: input, shape index: {}]
  %s3 = inlined_call_operand.hbm [shape: f32[32,64], index: 3, kind: input, shape index: {}]
  %s4 = inlined_call_operand.vmem [shape: f32[3,64], index: 4, kind: input, shape index: {}]
  %s5 = inlined_call_operand.hbm [shape: f32[1,1], index: 5, kind: output, shape index: {}]
  %s6 = sld [smem:[#allocation0]]
  $region38: #{tpu_custom_call.1} parent=0
    _
  %s8 = ssub.s32 1, %s6
  %s9 = scalar_select 0, %s8, %s6
  $region1: #{tpu_custom_call.1} parent=0
    #allocation2 [shape = 'u8[4096]{0}', space=vmem, size = 0x1000, scoped, tag = 'input window, operand 1, single buffered']
    #allocation3 [shape = 's32[1]{0}', space=sflag, size = 0x4, scoped, tag = 'scoped memory for tpu_custom_call.1']
    #allocation4 [shape = 's32[1]{0}', space=sflag, size = 0x4, scoped, tag = 'scoped memory for tpu_custom_call.1']
    #allocation5 [shape = 'u8[16384]{0}', space=vmem, size = 0x4000, scoped, tag = 'input window, operand 3, single buffered']
    #allocation6 [shape = 's32[1]{0}', space=sflag, size = 0x4, scoped, tag = 'scoped memory for tpu_custom_call.1']
    #allocation7 [shape = 'u8[512]{0}', space=vmem, size = 0x400, scoped, tag = 'output window, operand 0, single buffered']
    %10 = vsyncpa [#allocation3], 0
    %11 = vsyncpa [#allocation6], 0
    %12 = vsyncpa [#allocation4], 0
    // Predicated region
    $region2: #{tpu_custom_call.1} parent=1 // pred_check
      _
    $region3: #{tpu_custom_call.1} parent=1 // pred_check_branch
      %14 = sbr.rel (0) target = $region5
    $region4: #{tpu_custom_call.1} parent=1 // pred_region
      _
    $region5: #{tpu_custom_call.1} parent=1 // pred_fallthru
      _
    // Predicated region
    $region6: #{tpu_custom_call.1} parent=1 // pred_check
      _
    $region7: #{tpu_custom_call.1} parent=1 // pred_check_branch
      %16 = sbr.rel (0) target = $region9
    $region8: #{tpu_custom_call.1} parent=1 // pred_region
      %s18 = ssub.s32 128, 128
      %19 = vsyncadd [#allocation3], %s18
      %s21 = sshll.u32 [#allocation2], 4
      %s22 = int_to_ptr.vmem [resolvable:$true] %s21
      %24 = dma.hbm_to_vmem [thread:$0]  %s1, 128, %s22, [#allocation3]
    $region9: #{tpu_custom_call.1} parent=1 // pred_fallthru
      _
    // Predicated region
    $region10: #{tpu_custom_call.1} parent=1 // pred_check
      _
    $region11: #{tpu_custom_call.1} parent=1 // pred_check_branch
      %26 = sbr.rel (0) target = $region13
    $region12: #{tpu_custom_call.1} parent=1 // pred_region
      _
    $region13: #{tpu_custom_call.1} parent=1 // pred_fallthru
      _
    // Predicated region
    $region14: #{tpu_custom_call.1} parent=1 // pred_check
      _
    $region15: #{tpu_custom_call.1} parent=1 // pred_check_branch
      %28 = sbr.rel (0) target = $region17
    $region16: #{tpu_custom_call.1} parent=1 // pred_region
      %s30 = ssub.s32 512, 512
      %31 = vsyncadd [#allocation6], %s30
      %s32 = sshll.u32 [#allocation5], 4
      %s33 = int_to_ptr.vmem [resolvable:$true] %s32
      %38 = dma.hbm_to_vmem [thread:$0]  %s3, 512, %s33, [#allocation6], 128, 128, 8
    $region17: #{tpu_custom_call.1} parent=1 // pred_fallthru
      _
    // Predicated region
    $region18: #{tpu_custom_call.1} parent=1 // pred_check
      _
    $region19: #{tpu_custom_call.1} parent=1 // pred_check_branch
      %40 = sbr.rel (0) target = $region21
    $region20: #{tpu_custom_call.1} parent=1 // pred_region
      _
    $region21: #{tpu_custom_call.1} parent=1 // pred_fallthru
      _
    // Predicated region
    $region22: #{tpu_custom_call.1} parent=1 // pred_check
      _
    $region23: #{tpu_custom_call.1} parent=1 // pred_check_branch
      %42 = sbr.rel (0) target = $region25
    $region24: #{tpu_custom_call.1} parent=1 // pred_region
      %43 = dma.done [#allocation3], 128
    $region25: #{tpu_custom_call.1} parent=1 // pred_fallthru
      _
    // Predicated region
    $region26: #{tpu_custom_call.1} parent=1 // pred_check
      _
    $region27: #{tpu_custom_call.1} parent=1 // pred_check_branch
      %45 = sbr.rel (0) target = $region29
    $region28: #{tpu_custom_call.1} parent=1 // pred_region
      %46 = dma.done [#allocation6], 512
    $region29: #{tpu_custom_call.1} parent=1 // pred_fallthru
      _
    %v47 = vld [vmem:[%s0] sm:$0xff]
    %v48 = vld [vmem:[#allocation2] sm:$0xff]
    %v49 = vld [vmem:[%s2] sm:$0xff]
    %v50 = vld [vmem:[#allocation5] sm:$0xff]
    %v51 = vld [vmem:[#allocation5 + $0x8] sm:$0xff]
    %v52 = vld [vmem:[#allocation5 + $0x10] sm:$0xff]
    %v53 = vld [vmem:[#allocation5 + $0x18] sm:$0xff]
    %v54 = vld [vmem:[%s4] sm:$0x1]
    %v55 = vld [vmem:[%s4 + $0x1] sm:$0x1]
    %v56 = vld [vmem:[%s4 + $0x2] sm:$0x1]
    %58 = vset.pattern.permute.xlu0 0
    %59 = vperm.xlu0 %58, %v49
    %v60 = vpop.permute.xlu0 %59
    %v62 = vmul.f32 %v47, %v60
    %v63 = vsub.f32 1.0, %v49
    %65 = vset.pattern.permute.xlu0 0
    %66 = vperm.xlu0 %65, %v63
    %v67 = vpop.permute.xlu0 %66
    %v69 = vmul.f32 %v48, %v67
    %v70 = vadd.f32 %v62, %v69
    %v71 = vlaneseq
    %v72 = vshrl.u32 %v71, 7
    %v73 = vsub.s32 0, %v72
    %v74 = vrot.slane %v54, %v73
    %vm75 = vcmask 261120
    %v77 = vsel %vm75, %v70, 0
    %v80 = vsel %vm75, %v47, 0
    %v83 = vsel %vm75, %v48, 0
    %85 = vmatprep.subr.mxu0 0.0
    %86 = vmatpush1.msra.mxu0 %v50
    %87 = vmatprep.subr.mxu0 0.0
    %88 = vmatpush1.msra.mxu0 %v51
    %89 = vmatprep.subr.mxu0 0.0
    %90 = vmatpush1.msra.mxu0 %v52
    %91 = vmatprep.subr.mxu0 0.0
    %92 = vmatpush1.msra.mxu0 %v53
    %93 = vmatprep.subr.mxu0 0.0
    %94 = vmatpush1.msra.mxu0 0.0
    %95 = vmatprep.subr.mxu0 0.0
    %96 = vmatpush1.msra.mxu0 0.0
    %97 = vmatprep.subr.mxu0 0.0
    %98 = vmatpush1.msra.mxu0 0.0
    %99 = vmatprep.subr.mxu0 0.0
    %100 = vmatpush1.msra.mxu0 0.0
    %101 = vmatprep.subr.mxu0 0.0
    %102 = vmatpush1.msra.mxu0 0.0
    %103 = vmatprep.subr.mxu0 0.0
    %104 = vmatpush1.msra.mxu0 0.0
    %105 = vmatprep.subr.mxu0 0.0
    %106 = vmatpush1.msra.mxu0 0.0
    %107 = vmatprep.subr.mxu0 0.0
    %108 = vmatpush1.msra.mxu0 0.0
    %109 = vmatprep.subr.mxu0 0.0
    %110 = vmatpush1.msra.mxu0 0.0
    %111 = vmatprep.subr.mxu0 0.0
    %112 = vmatpush1.msra.mxu0 0.0
    %113 = vmatprep.subr.mxu0 0.0
    %114 = vmatpush1.msra.mxu0 0.0
    %115 = vmatprep.subr.mxu0 0.0
    %116 = vmatpush1.msra.mxu0 0.0
    %117 = vmatprep.subr.mxu0 0.0
    %118 = vmatpush1.msra.mxu0 0.0
    %119 = vmatprep.subr.mxu0 0.0
    %120 = vmatpush1.msra.mxu0 0.0
    %121 = vmatprep.subr.mxu0 0.0
    %122 = vmatpush1.msra.mxu0 0.0
    %123 = vmatprep.subr.mxu0 0.0
    %124 = vmatpush1.msra.mxu0 0.0
    %125 = vmatprep.subr.mxu0 0.0
    %126 = vmatpush1.msra.mxu0 0.0
    %127 = vmatprep.subr.mxu0 0.0
    %128 = vmatpush1.msra.mxu0 0.0
    %129 = vmatprep.subr.mxu0 0.0
    %130 = vmatpush1.msra.mxu0 0.0
    %131 = vmatprep.subr.mxu0 0.0
    %132 = vmatpush1.msra.mxu0 0.0
    %133 = vmatprep.subr.mxu0 0.0
    %134 = vmatpush1.msra.mxu0 0.0
    %135 = vmatprep.subr.mxu0 0.0
    %136 = vmatpush1.msra.mxu0 0.0
    %137 = vmatprep.subr.mxu0 0.0
    %138 = vmatpush1.msra.mxu0 0.0
    %139 = vmatprep.subr.mxu0 0.0
    %140 = vmatpush1.msra.mxu0 0.0
    %141 = vmatprep.subr.mxu0 0.0
    %142 = vmatpush1.msra.mxu0 0.0
    %143 = vmatprep.subr.mxu0 0.0
    %144 = vmatpush1.msra.mxu0 0.0
    %145 = vmatprep.subr.mxu0 0.0
    %146 = vmatpush1.msra.mxu0 0.0
    %147 = vmatprep.subr.mxu0 0.0
    %148 = vmatpush1.msra.mxu0 0.0
    %149 = vmatprep.mubr.f32.mxu0 0.0
    %150 = vmatmul.mubr.f32.gmra.mrb[0].mxu0 %v77
    %v151 = vpop.f32.mrb[0].mxu0
    %v152 = vadd.f32 %v74, %v151
    %v153 = vpop.f32.mrb[0].mxu0
    %154 = vmatprep.mubr.f32.mxu0 0.0
    %155 = vmatmul.mubr.f32.gmra.mrb[0].mxu0 %v80
    %v156 = vpop.f32.mrb[0].mxu0
    %v157 = vadd.f32 %v74, %v156
    %v158 = vpop.f32.mrb[0].mxu0
    %159 = vmatprep.mubr.f32.mxu0 0.0
    %160 = vmatmul.mubr.f32.gmra.mrb[0].mxu0 %v83
    %v161 = vpop.f32.mrb[0].mxu0
    %v162 = vadd.f32 %v74, %v161
    %v163 = vpop.f32.mrb[0].mxu0
    %164 = vdwg.mxu0
    %v165 = vmax.f32 %v157, 0.0
    %v166 = vmax.f32 %v162, 0.0
    %v167 = vlaneseq
    %v168 = vshrl.u32 %v167, 7
    %v169 = vsub.s32 0, %v168
    %v170 = vrot.slane %v55, %v169
    %v171 = vmul.f32 %v165, %v170
    %vm172 = vcmask 523264
    %v173 = vsel %vm172, %v171, 0.0
    %174 = vadd.xlane.f32.xlu0 %v173
    %v175 = vpop.xlane.xlu0 %174
    %v176 = vrot.slane %v175, 4
    %v177 = vadd.f32 %v175, %v176
    %v178 = vrot.slane %v177, 2
    %v179 = vadd.f32 %v177, %v178
    %v180 = vrot.slane %v179, 1
    %v181 = vadd.f32 %v179, %v180
    %s182 = vtos %v181
    %v183 = vstv %s182
    %v184 = vmul.f32 %v56, 8.0
    %v185 = vadd.f32 %v183, %v184
    %v186 = vmul.f32 %v166, %v170
    %v187 = vsel %vm172, %v186, 0.0
    %188 = vadd.xlane.f32.xlu0 %v187
    %v189 = vpop.xlane.xlu0 %188
    %v190 = vrot.slane %v189, 4
    %v191 = vadd.f32 %v189, %v190
    %v192 = vrot.slane %v191, 2
    %v193 = vadd.f32 %v191, %v192
    %v194 = vrot.slane %v193, 1
    %v195 = vadd.f32 %v193, %v194
    %s196 = vtos %v195
    %v197 = vstv %s196
    %v198 = vadd.f32 %v197, %v184
    %vm199 = vcmp.gt.f32.partialorder %v152, 0.0
    %v200 = vsel %vm199, 1, 0
    %v201 = vcvt.s32.f32 %v200
    %v202 = vmul.f32 %v201, %v170
    %v204 = vsel %vm172, %v202, 0
    %v207 = vsel %vm172, %v50, 0
    %v210 = vsel %vm172, %v51, 0
    %v213 = vsel %vm172, %v52, 0
    %v216 = vsel %vm172, %v53, 0
    %218 = vmatprep.subr.mxu0 0.0
    %219 = vmatpush1.xpose.msra.mxu0 %v207
    %220 = vmatprep.subr.mxu0 0.0
    %221 = vmatpush1.xpose.msra.mxu0 %v210
    %222 = vmatprep.subr.mxu0 0.0
    %223 = vmatpush1.xpose.msra.mxu0 %v213
    %224 = vmatprep.subr.mxu0 0.0
    %225 = vmatpush1.xpose.msra.mxu0 %v216
    %226 = vmatprep.subr.mxu0 0.0
    %227 = vmatpush1.xpose.msra.mxu0 0.0
    %228 = vmatprep.subr.mxu0 0.0
    %229 = vmatpush1.xpose.msra.mxu0 0.0
    %230 = vmatprep.subr.mxu0 0.0
    %231 = vmatpush1.xpose.msra.mxu0 0.0
    %232 = vmatprep.subr.mxu0 0.0
    %233 = vmatpush1.xpose.msra.mxu0 0.0
    %234 = vmatprep.subr.mxu0 0.0
    %235 = vmatpush1.xpose.msra.mxu0 0.0
    %236 = vmatprep.subr.mxu0 0.0
    %237 = vmatpush1.xpose.msra.mxu0 0.0
    %238 = vmatprep.subr.mxu0 0.0
    %239 = vmatpush1.xpose.msra.mxu0 0.0
    %240 = vmatprep.subr.mxu0 0.0
    %241 = vmatpush1.xpose.msra.mxu0 0.0
    %242 = vmatprep.subr.mxu0 0.0
    %243 = vmatpush1.xpose.msra.mxu0 0.0
    %244 = vmatprep.subr.mxu0 0.0
    %245 = vmatpush1.xpose.msra.mxu0 0.0
    %246 = vmatprep.subr.mxu0 0.0
    %247 = vmatpush1.xpose.msra.mxu0 0.0
    %248 = vmatprep.subr.mxu0 0.0
    %249 = vmatpush1.xpose.msra.mxu0 0.0
    %250 = vmatprep.subr.mxu0 0.0
    %251 = vmatpush1.xpose.msra.mxu0 0.0
    %252 = vmatprep.subr.mxu0 0.0
    %253 = vmatpush1.xpose.msra.mxu0 0.0
    %254 = vmatprep.subr.mxu0 0.0
    %255 = vmatpush1.xpose.msra.mxu0 0.0
    %256 = vmatprep.subr.mxu0 0.0
    %257 = vmatpush1.xpose.msra.mxu0 0.0
    %258 = vmatprep.subr.mxu0 0.0
    %259 = vmatpush1.xpose.msra.mxu0 0.0
    %260 = vmatprep.subr.mxu0 0.0
    %261 = vmatpush1.xpose.msra.mxu0 0.0
    %262 = vmatprep.subr.mxu0 0.0
    %263 = vmatpush1.xpose.msra.mxu0 0.0
    %264 = vmatprep.subr.mxu0 0.0
    %265 = vmatpush1.xpose.msra.mxu0 0.0
    %266 = vmatprep.subr.mxu0 0.0
    %267 = vmatpush1.xpose.msra.mxu0 0.0
    %268 = vmatprep.subr.mxu0 0.0
    %269 = vmatpush1.xpose.msra.mxu0 0.0
    %270 = vmatprep.subr.mxu0 0.0
    %271 = vmatpush1.xpose.msra.mxu0 0.0
    %272 = vmatprep.subr.mxu0 0.0
    %273 = vmatpush1.xpose.msra.mxu0 0.0
    %274 = vmatprep.subr.mxu0 0.0
    %275 = vmatpush1.xpose.msra.mxu0 0.0
    %276 = vmatprep.subr.mxu0 0.0
    %277 = vmatpush1.xpose.msra.mxu0 0.0
    %278 = vmatprep.subr.mxu0 0.0
    %279 = vmatpush1.xpose.msra.mxu0 0.0
    %280 = vmatprep.subr.mxu0 0.0
    %281 = vmatpush1.xpose.msra.mxu0 0.0
    %282 = vmatprep.mubr.f32.mxu0 0.0
    %283 = vmatmul.mubr.f32.gmra.mrb[0].mxu0 %v204
    %v284 = vpop.f32.mrb[0].mxu0
    %v285 = vadd.f32 0.0, %v284
    %v286 = vpop.f32.mrb[0].mxu0
    %287 = vdwg.mxu0
    %v288 = vmul.f32 %v285, %v285
    %v289 = vsel %vm75, %v288, 0.0
    %290 = vadd.xlane.f32.xlu0 %v289
    %v291 = vpop.xlane.xlu0 %290
    %v292 = vrsqrt.pop %v291
    %v293 = vmul.f32 %v291, %v292
    %vm294 = vcmp.eq.f32.partialorder %v291, inf
    %v295 = vsel %vm294, %v291, %v293
    %vm296 = vcmp.eq.f32.partialorder %v291, 0.0
    %v297 = vand.u32 %v291, 2147483648
    %v298 = vsel %vm296, %v297, %v295
    %v299 = vsub.f32 %v298, 1.0
    %v300 = vmul.f32 %v299, %v299
    %vm301 = vcmask 7168
    %v302 = vsel %vm301, %v300, 0.0
    %303 = vadd.xlane.f32.xlu0 %v302
    %v304 = vpop.xlane.xlu0 %303
    %v305 = vrot.slane %v304, 4
    %v306 = vadd.f32 %v304, %v305
    %v307 = vrot.slane %v306, 2
    %v308 = vadd.f32 %v306, %v307
    %v309 = vrot.slane %v308, 1
    %v310 = vadd.f32 %v308, %v309
    %s311 = vtos %v310
    %v312 = vstv %s311
    %v313 = vsub.f32 %v185, %v198
    %v314 = vsub.f32 0.0, %v313
    %v315 = vmul.f32 %v312, 10.0
    %v316 = vadd.f32 %v314, %v315
    %v317 = vmul.f32 %v316, 0.125
    %vm318 = vcmask 0
    %319 = vst.msk [vmem:[#allocation7] sm:$0x1] %vm318, %v317
    // Predicated region
    $region30: #{tpu_custom_call.1} parent=1 // pred_check
      _
    $region31: #{tpu_custom_call.1} parent=1 // pred_check_branch
      %321 = sbr.rel (0) target = $region33
    $region32: #{tpu_custom_call.1} parent=1 // pred_region
      %s323 = ssub.s32 16, 16
      %324 = vsyncadd [#allocation4], %s323
      %s326 = sshll.u32 [#allocation7], 4
      %s327 = int_to_ptr.vmem [resolvable:$true] %s326
      %329 = dma.vmem_to_hbm [thread:$0]  %s327, 16, %s5, [#allocation4]
    $region33: #{tpu_custom_call.1} parent=1 // pred_fallthru
      _
    // Predicated region
    $region34: #{tpu_custom_call.1} parent=1 // pred_check
      _
    $region35: #{tpu_custom_call.1} parent=1 // pred_check_branch
      %331 = sbr.rel (0) target = $region37
    $region36: #{tpu_custom_call.1} parent=1 // pred_region
      %332 = dma.done [#allocation4], 16
    $region37: #{tpu_custom_call.1} parent=1 // pred_fallthru
      _
    %333 = vsyncpa [#allocation3], 1
    %334 = vsyncpa [#allocation6], 1
    %335 = vsyncpa [#allocation4], 1

</llo_original>
